<compile_context>
chip_gen: v7x
topology: tpu7x:2x2x1
jax: 0.10.0
libtpu: 0.0.40
codegen_flags: <defaults>
</compile_context>

<pallas_src>
import functools

import jax
import jax.numpy as jnp
from jax import lax
from jax.experimental import pallas as pl
from jax.experimental.pallas import tpu as pltpu


def _round_up(x, m):
    return (x + m - 1) // m * m


def _gmrf_kernel(fblk_ref, lblk_ref, fk_ref, gram_ref, vec_ref,
                 gram_acc, vec_acc, *, mxu_dtype):
    k = pl.program_id(1)            # k-tile index of L's column axis (reduction)
    i = pl.program_id(2)            # row-block index within this core's range (reduction)
    nbk = pl.num_programs(1)
    nb = pl.num_programs(2)

    @pl.when(jnp.logical_and(k == 0, i == 0))
    def _():
        gram_acc[...] = jnp.zeros_like(gram_acc)
        vec_acc[...] = jnp.zeros_like(vec_acc)

    fblk = fblk_ref[...]                                   # (TN, Dp) f32

    # gram / ||F||^2 depend only on the row block -> accumulate once (at k == 0).
    @pl.when(k == 0)
    def _():
        fmx = fblk.astype(mxu_dtype)
        # gram += F_blk^T @ F_blk (contract over the node axis; no explicit transpose).
        gram_acc[...] += lax.dot_general(
            fmx, fmx, dimension_numbers=(((0,), (0,)), ((), ())),
            preferred_element_type=jnp.float32)
        vec_acc[1:2, :] += jnp.sum(fblk * fblk, axis=0, keepdims=True)

    # Partial L @ F for this (row-block, k-tile); accumulation stays f32 on the MXU.
    lf = jnp.dot(lblk_ref[...].astype(mxu_dtype),
                 fk_ref[...].astype(mxu_dtype),
                 preferred_element_type=jnp.float32)
    # Lane-dense per-column partial sums (reduced to scalars in the wrapper) -- avoids
    # masked 1-lane stores and keeps the reduction path in f32 on the VPU.
    vec_acc[0:1, :] += jnp.sum(fblk * lf, axis=0, keepdims=True)

    @pl.when(jnp.logical_and(k == nbk - 1, i == nb - 1))
    def _():
        gram_ref[0] = gram_acc[...]
        vec_ref[0] = vec_acc[...]


def gmrf_loss(features, laplacian, lambda6, beta=1.0, *, use_bf16_matmul=False):
    n, d = features.shape
    C = 2                                        # megacore split (2 TCs on v7x; no-op elsewhere)
    d_p = _round_up(max(d, 1), 128)              # lane-dense feature dim
    n128 = _round_up(max(n, 1), 128)

    # Row tile per core (multiple of 8) and node padding.
    tn = min(256, n128 // C)
    n_p = _round_up(n, tn * C)                   # multiple of 128 by construction

    # k-tile for L's column axis: largest multiple of 128 that divides n_p, capped for VMEM.
    tk = min(2048, n_p)
    while n_p % tk != 0:
        tk -= 128

    def _vmem_bytes(tn_, tk_):
        return 4 * (2 * tn_ * d_p                # F row-block (double-buffered)
                    + 2 * tn_ * tk_              # L tile (double-buffered, dominant)
                    + 2 * tk_ * d_p              # F k-tile (double-buffered)
                    + d_p * d_p + 8 * d_p        # accumulator scratch
                    + 2 * (d_p * d_p + 8 * d_p))  # outputs (conservatively x2)

    budget = 40 * 1024 * 1024
    while _vmem_bytes(tn, tk) > budget and tk > 128:
        tk_new = tk - 128
        while n_p % tk_new != 0:
            tk_new -= 128
        tk = tk_new

    nb = (n_p // C) // tn                        # row blocks per core
    nbk = n_p // tk                              # k tiles

    f_pad = jnp.zeros((n_p, d_p), jnp.float32).at[:n, :d].set(features.astype(jnp.float32))
    l_pad = jnp.zeros((n_p, n_p), jnp.float32).at[:n, :n].set(laplacian.astype(jnp.float32))

    # bf16 MXU operands halve L's HBM traffic on v6e/v7x; default off to preserve tight
    # tolerances (the l2 term is a difference of large partial sums).
    mxu_dtype = jnp.bfloat16 if use_bf16_matmul else jnp.float32

    vmem_limit = int(min(max(_vmem_bytes(tn, tk) + 8 * 1024 * 1024, 32 * 1024 * 1024),
                         48 * 1024 * 1024))

    cost = pl.CostEstimate(
        flops=2 * n_p * n_p * d_p + 2 * n_p * d_p * d_p + 4 * n_p * d_p,
        transcendentals=0,
        bytes_accessed=4 * (n_p * n_p                       # L streamed once
                            + n_p * d_p * (1 + nbk)         # F k-tiles + re-streamed row blocks
                            + C * (d_p * d_p + 8 * d_p)))   # per-core outputs

    gram_p, vec_p = pl.pallas_call(
        functools.partial(_gmrf_kernel, mxu_dtype=mxu_dtype),
        out_shape=(
            jax.ShapeDtypeStruct((C, d_p, d_p), jnp.float32),
            jax.ShapeDtypeStruct((C, 8, d_p), jnp.float32),
        ),
        grid=(C, nbk, nb),
        in_specs=[
            pl.BlockSpec((tn, d_p), lambda c, k, i: (c * nb + i, 0)),   # F row-block
            pl.BlockSpec((tn, tk), lambda c, k, i: (c * nb + i, k)),    # L tile (streamed)
            pl.BlockSpec((tk, d_p), lambda c, k, i: (k, 0)),            # F k-tile
        ],
        out_specs=(
            pl.BlockSpec((1, d_p, d_p), lambda c, k, i: (c, 0, 0)),     # per-core partial gram
            pl.BlockSpec((1, 8, d_p), lambda c, k, i: (c, 0, 0)),       # per-core l2/ssq partials
        ),
        scratch_shapes=[
            pltpu.VMEM((d_p, d_p), jnp.float32),
            pltpu.VMEM((8, d_p), jnp.float32),
        ],
        compiler_params=pltpu.CompilerParams(
            dimension_semantics=("parallel", "arbitrary", "arbitrary"),
            vmem_limit_bytes=vmem_limit),
        cost_estimate=cost,
    )(f_pad, l_pad, f_pad)

    # Combine per-core partials (zero-padded rows/cols contribute nothing).
    gram = jnp.sum(gram_p, axis=0)[:d, :d]
    l2 = jnp.sum(vec_p[:, 0, :])
    ssq = jnp.sum(vec_p[:, 1, :])

    # TODO(synk): logdet (matrix factorization) has no Pallas TPU primitive; plain JAX here.
    eye = jnp.eye(d, dtype=jnp.float32)
    _, l1 = jnp.linalg.slogdet(eye + gram / beta)     # matrix is SPD -> sign is +1

    mse_loss = (l2 - l1 / lambda6) / n
    l2_reg = jnp.sqrt(ssq)
    return mse_loss + 0.001 * l2_reg


def _reference_loss(f, lap, lambda6, beta=1.0):
    """Pure-JAX reference matching the PyTorch forward exactly."""
    n, d = f.shape
    eye = jnp.eye(d, dtype=jnp.float32)
    _, l1 = jnp.linalg.slogdet(eye + f.T @ f / beta)
    l2 = jnp.sum(f * (lap @ f))
    mse = (l2 - l1 / lambda6) / n
    return mse + 0.001 * jnp.linalg.norm(f)


if __name__ == "__main__":
    key = jax.random.PRNGKey(0)
    k1, k2 = jax.random.split(key)

    num_nodes, hidden_dim = 16, 32
    features = jax.random.normal(k1, (num_nodes, hidden_dim), dtype=jnp.float32)

    # Deterministic dense graph Laplacian L = D - A for a symmetric random graph.
    a = (jax.random.uniform(k2, (num_nodes, num_nodes)) > 0.7).astype(jnp.float32)
    a = jnp.triu(a, k=1)
    a = a + a.T
    laplacian = jnp.diag(jnp.sum(a, axis=1)) - a

    lambda6 = jnp.float32(2.0)

    out = gmrf_loss(features, laplacian, lambda6, beta=1.0)
    out = jax.block_until_ready(out)

    ref = _reference_loss(features, laplacian, lambda6, beta=1.0)
    assert jnp.allclose(out, ref, rtol=1e-3, atol=1e-3), (out, ref)

    print("KERNEL_OK")
</pallas_src>

<mosaic_0001>
module attributes {stable_mosaic.version = 11 : i64} {
  func.func @_gmrf_kernel(%arg0: i32, %arg1: i32, %arg2: i32, %arg3: memref<64x128xf32, #tpu.memory_space<vmem>>, %arg4: memref<64x128xf32, #tpu.memory_space<vmem>>, %arg5: memref<128x128xf32, #tpu.memory_space<vmem>>, %arg6: memref<1x128x128xf32, #tpu.memory_space<vmem>>, %arg7: memref<1x8x128xf32, #tpu.memory_space<vmem>>, %arg8: memref<128x128xf32, #tpu.memory_space<vmem>>, %arg9: memref<8x128xf32, #tpu.memory_space<vmem>>) attributes {dimension_semantics = [#tpu.dimension_semantics<parallel>, #tpu.dimension_semantics<arbitrary>, #tpu.dimension_semantics<arbitrary>], iteration_bounds = array<i64: 2, 1, 1>, scalar_prefetch = 0 : i64, scratch_operands = 2 : i64, tpu.core_type = #tpu.core_type<tc>, window_params = [{transform_indices = @transform_0, window_bounds = array<i64: 64, 128>}, {transform_indices = @transform_1, window_bounds = array<i64: 64, 128>}, {transform_indices = @transform_2, window_bounds = array<i64: 128, 128>}, {transform_indices = @transform_3, window_bounds = array<i64: 1, 128, 128>}, {transform_indices = @transform_4, window_bounds = array<i64: 1, 8, 128>}]} {
    %c0_i32 = arith.constant 0 : i32
    %0 = arith.cmpi eq, %arg1, %c0_i32 : i32
    %c0_i32_0 = arith.constant 0 : i32
    %1 = arith.cmpi eq, %arg2, %c0_i32_0 : i32
    %2 = arith.andi %0, %1 : i1
    %3 = arith.extui %2 : i1 to i32
    %c0_i32_1 = arith.constant 0 : i32
    %4 = arith.cmpi ne, %3, %c0_i32_1 : i32
    scf.if %4 {
      %cst_17 = arith.constant 0.000000e+00 : f32
      %23 = vector.broadcast %cst_17 : f32 to vector<128x128xf32>
      %c0_18 = arith.constant 0 : index
      %c0_19 = arith.constant 0 : index
      %24 = vector.load %arg8[%c0_18, %c0_19] : memref<128x128xf32, #tpu.memory_space<vmem>>, vector<128x128xf32>
      tpu.vector_store %arg8[%c0_18, %c0_19], %23 {strides = array<i32>} : memref<128x128xf32, #tpu.memory_space<vmem>>, vector<128x128xf32>,
      %cst_20 = arith.constant 0.000000e+00 : f32
      %25 = vector.broadcast %cst_20 : f32 to vector<8x128xf32>
      %c0_21 = arith.constant 0 : index
      %c0_22 = arith.constant 0 : index
      %26 = vector.load %arg9[%c0_21, %c0_22] : memref<8x128xf32, #tpu.memory_space<vmem>>, vector<8x128xf32>
      tpu.vector_store %arg9[%c0_21, %c0_22], %25 {strides = array<i32>} : memref<8x128xf32, #tpu.memory_space<vmem>>, vector<8x128xf32>,
    } else {
    }
    %c0 = arith.constant 0 : index
    %c0_2 = arith.constant 0 : index
    %5 = vector.load %arg3[%c0, %c0_2] : memref<64x128xf32, #tpu.memory_space<vmem>>, vector<64x128xf32>
    %c0_i32_3 = arith.constant 0 : i32
    %6 = arith.cmpi eq, %arg1, %c0_i32_3 : i32
    %7 = arith.extui %6 : i1 to i32
    %c0_i32_4 = arith.constant 0 : i32
    %8 = arith.cmpi ne, %7, %c0_i32_4 : i32
    scf.if %8 {
      %c0_17 = arith.constant 0 : index
      %c0_18 = arith.constant 0 : index
      %23 = vector.load %arg8[%c0_17, %c0_18] : memref<128x128xf32, #tpu.memory_space<vmem>>, vector<128x128xf32>
      %cst_19 = arith.constant dense<0.000000e+00> : vector<128x128xf32>
      %24 = tpu.matmul %5, %5, %cst_19 {dimension_numbers = #tpu.dot_dimension_numbers<[0], [0], [1], [1], [0, 1, 1, 1], [], []>} : vector<64x128xf32>, vector<64x128xf32>, vector<128x128xf32> -> vector<128x128xf32>
      %25 = arith.addf %23, %24 : vector<128x128xf32>
      %c0_20 = arith.constant 0 : index
      %c0_21 = arith.constant 0 : index
      %26 = vector.load %arg8[%c0_20, %c0_21] : memref<128x128xf32, #tpu.memory_space<vmem>>, vector<128x128xf32>
      tpu.vector_store %arg8[%c0_20, %c0_21], %25 {strides = array<i32>} : memref<128x128xf32, #tpu.memory_space<vmem>>, vector<128x128xf32>,
      %c1 = arith.constant 1 : index
      %c0_22 = arith.constant 0 : index
      %27 = vector.load %arg9[%c1, %c0_22] : memref<8x128xf32, #tpu.memory_space<vmem>>, vector<1x128xf32>
      %28 = arith.mulf %5, %5 : vector<64x128xf32>
      %cst_23 = arith.constant dense<0.000000e+00> : vector<128xf32>
      %29 = vector.multi_reduction <add>, %28, %cst_23 [0] : vector<64x128xf32> to vector<128xf32>
      %30 = vector.shape_cast %29 : vector<128xf32> to vector<1x128xf32>
      %31 = arith.addf %27, %30 : vector<1x128xf32>
      %c1_24 = arith.constant 1 : index
      %c0_25 = arith.constant 0 : index
      %32 = vector.load %arg9[%c1_24, %c0_25] : memref<8x128xf32, #tpu.memory_space<vmem>>, vector<1x128xf32>
      tpu.vector_store %arg9[%c1_24, %c0_25], %31 {strides = array<i32>} : memref<8x128xf32, #tpu.memory_space<vmem>>, vector<1x128xf32>,
    } else {
    }
    %c0_5 = arith.constant 0 : index
    %c0_6 = arith.constant 0 : index
    %9 = vector.load %arg4[%c0_5, %c0_6] : memref<64x128xf32, #tpu.memory_space<vmem>>, vector<64x128xf32>
    %c0_7 = arith.constant 0 : index
    %c0_8 = arith.constant 0 : index
    %10 = vector.load %arg5[%c0_7, %c0_8] : memref<128x128xf32, #tpu.memory_space<vmem>>, vector<128x128xf32>
    %cst = arith.constant dense<0.000000e+00> : vector<64x128xf32>
    %11 = tpu.matmul %9, %10, %cst {dimension_numbers = #tpu.dot_dimension_numbers<[1], [0], [0], [1], [0, 0, 1, 1], [], []>} : vector<64x128xf32>, vector<128x128xf32>, vector<64x128xf32> -> vector<64x128xf32>
    %c0_9 = arith.constant 0 : index
    %c0_10 = arith.constant 0 : index
    %12 = vector.load %arg9[%c0_9, %c0_10] : memref<8x128xf32, #tpu.memory_space<vmem>>, vector<1x128xf32>
    %13 = arith.mulf %5, %11 : vector<64x128xf32>
    %cst_11 = arith.constant dense<0.000000e+00> : vector<128xf32>
    %14 = vector.multi_reduction <add>, %13, %cst_11 [0] : vector<64x128xf32> to vector<128xf32>
    %15 = vector.shape_cast %14 : vector<128xf32> to vector<1x128xf32>
    %16 = arith.addf %12, %15 : vector<1x128xf32>
    %c0_12 = arith.constant 0 : index
    %c0_13 = arith.constant 0 : index
    %17 = vector.load %arg9[%c0_12, %c0_13] : memref<8x128xf32, #tpu.memory_space<vmem>>, vector<1x128xf32>
    tpu.vector_store %arg9[%c0_12, %c0_13], %16 {strides = array<i32>} : memref<8x128xf32, #tpu.memory_space<vmem>>, vector<1x128xf32>,
    %c0_i32_14 = arith.constant 0 : i32
    %18 = arith.cmpi eq, %arg1, %c0_i32_14 : i32
    %c0_i32_15 = arith.constant 0 : i32
    %19 = arith.cmpi eq, %arg2, %c0_i32_15 : i32
    %20 = arith.andi %18, %19 : i1
    %21 = arith.extui %20 : i1 to i32
    %c0_i32_16 = arith.constant 0 : i32
    %22 = arith.cmpi ne, %21, %c0_i32_16 : i32
    scf.if %22 {
      %c0_17 = arith.constant 0 : index
      %c0_18 = arith.constant 0 : index
      %23 = vector.load %arg8[%c0_17, %c0_18] : memref<128x128xf32, #tpu.memory_space<vmem>>, vector<128x128xf32>
      %c0_19 = arith.constant 0 : index
      %c0_20 = arith.constant 0 : index
      %c0_21 = arith.constant 0 : index
      %24 = vector.load %arg6[%c0_19, %c0_20, %c0_21] : memref<1x128x128xf32, #tpu.memory_space<vmem>>, vector<1x128x128xf32>
      %25 = vector.shape_cast %24 : vector<1x128x128xf32> to vector<128x128xf32>
      %26 = vector.shape_cast %23 : vector<128x128xf32> to vector<1x128x128xf32>
      tpu.vector_store %arg6[%c0_19, %c0_20, %c0_21], %26 {strides = array<i32>} : memref<1x128x128xf32, #tpu.memory_space<vmem>>, vector<1x128x128xf32>,
      %c0_22 = arith.constant 0 : index
      %c0_23 = arith.constant 0 : index
      %27 = vector.load %arg9[%c0_22, %c0_23] : memref<8x128xf32, #tpu.memory_space<vmem>>, vector<8x128xf32>
      %c0_24 = arith.constant 0 : index
      %c0_25 = arith.constant 0 : index
      %c0_26 = arith.constant 0 : index
      %28 = vector.load %arg7[%c0_24, %c0_25, %c0_26] : memref<1x8x128xf32, #tpu.memory_space<vmem>>, vector<1x8x128xf32>
      %29 = vector.shape_cast %28 : vector<1x8x128xf32> to vector<8x128xf32>
      %30 = vector.shape_cast %27 : vector<8x128xf32> to vector<1x8x128xf32>
      tpu.vector_store %arg7[%c0_24, %c0_25, %c0_26], %30 {strides = array<i32>} : memref<1x8x128xf32, #tpu.memory_space<vmem>>, vector<1x8x128xf32>,
    } else {
    }
    return
  }
  func.func @transform_0(%arg0: i32, %arg1: i32, %arg2: i32) -> (i32, i32) {
    %c1_i32 = arith.constant 1 : i32
    %0 = arith.muli %arg0, %c1_i32 : i32
    %1 = arith.addi %0, %arg2 : i32
    %c0_i32 = arith.constant 0 : i32
    %c0_i32_0 = arith.constant 0 : i32
    return %1, %c0_i32 : i32, i32
  }
  func.func @transform_1(%arg0: i32, %arg1: i32, %arg2: i32) -> (i32, i32) {
    %c1_i32 = arith.constant 1 : i32
    %0 = arith.muli %arg0, %c1_i32 : i32
    %1 = arith.addi %0, %arg2 : i32
    %c0_i32 = arith.constant 0 : i32
    return %1, %arg1 : i32, i32
  }
  func.func @transform_2(%arg0: i32, %arg1: i32, %arg2: i32) -> (i32, i32) {
    %c0_i32 = arith.constant 0 : i32
    %c0_i32_0 = arith.constant 0 : i32
    return %arg1, %c0_i32 : i32, i32
  }
  func.func @transform_3(%arg0: i32, %arg1: i32, %arg2: i32) -> (i32, i32, i32) {
    %c0_i32 = arith.constant 0 : i32
    %c0_i32_0 = arith.constant 0 : i32
    %c0_i32_1 = arith.constant 0 : i32
    return %arg0, %c0_i32, %c0_i32_0 : i32, i32, i32
  }
  func.func @transform_4(%arg0: i32, %arg1: i32, %arg2: i32) -> (i32, i32, i32) {
    %c0_i32 = arith.constant 0 : i32
    %c0_i32_0 = arith.constant 0 : i32
    %c0_i32_1 = arith.constant 0 : i32
    return %arg0, %c0_i32, %c0_i32_0 : i32, i32, i32
  }
}

</mosaic_0001>

<llo_original>
// kernel: tpu_custom_call.1
$region0: #{tpu_custom_call.1}
  #allocation0 [shape = 'u32[]', space=smem, size = 0x4, offset = 0x4, fixed_abs, tag = 'smem constant byte address 0x4 - core index']
  #allocation1 [shape = 'u32[144,128]{1,0:T(1,128)}', space=vmem, size = 0x12000, scoped, tag = 'internal scratch']
  #allocation2 [shape = 'f32[128,128]{1,0:T(8,128)}', space=vmem, size = 0x10000, scoped, tag = 'scratch operand']
  #allocation3 [shape = 'f32[8,128]{1,0:T(8,128)}', space=vmem, size = 0x1000, scoped, tag = 'scratch operand']
  %s0 = inlined_call_operand.hbm [shape: f32[128,128], index: 0, kind: input, shape index: {}]
  %s1 = inlined_call_operand.hbm [shape: f32[128,128], index: 1, kind: input, shape index: {}]
  %s2 = inlined_call_operand.hbm [shape: f32[128,128], index: 2, kind: input, shape index: {}]
  %s3 = inlined_call_operand.hbm [shape: f32[2,128,128], index: 3, kind: output, shape index: {0}]
  %s4 = inlined_call_operand.hbm [shape: f32[2,8,128], index: 4, kind: output, shape index: {1}]
  %5 = xla_tuple %s3, %s4
  %s6 = sld [smem:[#allocation0]]
  $region77: #{tpu_custom_call.1} parent=0
    _
  %s8 = ssub.s32 1, %s6
  %s9 = scalar_select 0, %s8, %s6
  $region1: #{tpu_custom_call.1} parent=0
    #allocation4 [shape = 'u8[65536]{0}', space=vmem, size = 0x10000, scoped, tag = 'input window, operand 0']
    #allocation5 [shape = 's32[2]{0}', space=sflag, size = 0x8, scoped, tag = 'scoped memory for tpu_custom_call.1']
    #allocation6 [shape = 's32[2]{0}', space=sflag, size = 0x8, scoped, tag = 'scoped memory for tpu_custom_call.1']
    #allocation7 [shape = 'u8[65536]{0}', space=vmem, size = 0x10000, scoped, tag = 'input window, operand 1']
    #allocation8 [shape = 's32[2]{0}', space=sflag, size = 0x8, scoped, tag = 'scoped memory for tpu_custom_call.1']
    #allocation9 [shape = 'u8[65536]{0}', space=vmem, size = 0x10000, scoped, tag = 'input window, operand 2, single buffered']
    #allocation10 [shape = 'u8[131072]{0}', space=vmem, size = 0x20000, scoped, tag = 'output window, operand 0']
    #allocation11 [shape = 'u8[8192]{0}', space=vmem, size = 0x2000, scoped, tag = 'output window, operand 1']
    #allocation12 [shape = 's32[2]{0}', space=sflag, size = 0x8, scoped, tag = 'scoped memory for tpu_custom_call.1']
    %10 = vsyncpa [#allocation5], 0
    %s11 = scalar_lea.sflag [#allocation5], 1
    %12 = vsyncpa %s11, 0
    %13 = vsyncpa [#allocation8], 0
    %s14 = scalar_lea.sflag [#allocation8], 1
    %15 = vsyncpa %s14, 0
    %16 = vsyncpa [#allocation6], 0
    %s17 = scalar_lea.sflag [#allocation6], 1
    %18 = vsyncpa %s17, 0
    %19 = vsyncpa [#allocation12], 0
    %s20 = scalar_lea.sflag [#allocation12], 1
    %21 = vsyncpa %s20, 0
    loop: start=0, step=1, limit=4
    $region2: #{tpu_custom_call.1} parent=1 // loop_pre_header
      _
    $region3: #{tpu_custom_call.1} parent=1 // loop_header
      %s23 = sphi 0, %s27
      %p24 = scmp.ge.s32.totalorder %s23, 4
      %s30 = sphi 0, %s49
      %s31 = sphi 0, %s45
      %s32 = sphi 0, %s41
      %s33 = sphi 0, %s30
      %s34 = sphi 0, %s31
      %s35 = sphi 0, %s32
      %s36 = sphi 0, %s33
      %s37 = sphi 0, %s34
      %s38 = sphi 0, %s35
      %s54 = sphi 0, %s56
      %s57 = sphi 0, %s54
      %s58 = sphi 0, %s57
      %s74 = sphi 0, %s58
      %s84 = sphi 0, %s86
      %s87 = sphi 0, %s84
      %s88 = sphi 0, %s87
      %s104 = sphi 0, %s88
      %s110 = sphi 0, %s112
      %s113 = sphi 0, %s110
      %s114 = sphi 0, %s113
      %s130 = sphi 0, %s114
      %s136 = sphi 0, %s138
      %s139 = sphi 0, %s136
      %s140 = sphi 0, %s139
      %s156 = sphi 0, %s140
      %s162 = sphi 0, %s164
      %s165 = sphi 0, %s162
      %s166 = sphi 0, %s165
      %s182 = sphi 0, %s166
    $region4: #{tpu_custom_call.1} parent=1 // loop_header_branch
      %26 = sbr.rel (%p24) target = $region8
    $region5: #{tpu_custom_call.1} parent=1 // loop_body
      %s28 = ssub.s32 %s23, 1
      %s29 = ssub.s32 %s23, 2
      %s39 = sadd.s32 1, %s32
      %p40 = scmp.ge.s32.totalorder %s39, 1
      %s41 = scalar_select %p40, 0, %s39
      %s42 = sadd.s32 1, %s31
      %s43 = scalar_select %p40, %s42, %s31
      %p44 = scmp.ge.s32.totalorder %s43, 1
      %s45 = scalar_select %p44, 0, %s43
      %s46 = sadd.s32 1, %s30
      %s47 = scalar_select %p44, %s46, %s30
      %p48 = scmp.ge.s32.totalorder %s47, 2
      %s49 = scalar_select %p48, 0, %s47
      %s50 = sadd.s32 %s30, %s32
      %s51 = sadd.s32 %s49, %s41
      %s52 = ssub.s32 %s50, %s51
      %p53 = scmp.eq.s32.totalorder %s52, 0
      %s55 = sadd.s32 %s54, 1
      %s56 = scalar_select %p53, %s54, %s55
      %p59 = pneg %p53
      %p60 = scmp.eq.s32.totalorder %s23, 1
      %p61 = por %p59, %p60
      %p62 = scmp.ne.s32.totalorder %s54, %s57
      %p63 = scmp.eq.s32.totalorder %s23, 0
      %p64 = por %p62, %p63
      %p65 = scmp.ne.s32.totalorder %s54, %s57
      %p66 = scmp.eq.s32.totalorder %s28, 1
      %p67 = por %p65, %p66
      %p68 = scmp.ne.s32.totalorder %s57, %s58
      %p69 = scmp.eq.s32.totalorder %s28, 0
      %p70 = por %p68, %p69
      %p71 = scmp.ne.s32.totalorder %s57, %s58
      %p72 = scmp.eq.s32.totalorder %s29, 1
      %p73 = por %p71, %p72
      %p75 = scmp.ne.s32.totalorder %s58, %s74
      %p76 = scmp.eq.s32.totalorder %s29, 0
      %p77 = por %p75, %p76
      %s78 = sadd.s32 %s30, %s32
      %s79 = sadd.s32 %s49, %s41
      %s80 = ssub.s32 %s78, %s79
      %s81 = ssub.s32 %s31, %s45
      %s82 = sor.u32 %s80, %s81
      %p83 = scmp.eq.s32.totalorder %s82, 0
      %s85 = sadd.s32 %s84, 1
      %s86 = scalar_select %p83, %s84, %s85
      %p89 = pneg %p83
      %p90 = scmp.eq.s32.totalorder %s23, 1
      %p91 = por %p89, %p90
      %p92 = scmp.ne.s32.totalorder %s84, %s87
      %p93 = scmp.eq.s32.totalorder %s23, 0
      %p94 = por %p92, %p93
      %p95 = scmp.ne.s32.totalorder %s84, %s87
      %p96 = scmp.eq.s32.totalorder %s28, 1
      %p97 = por %p95, %p96
      %p98 = scmp.ne.s32.totalorder %s87, %s88
      %p99 = scmp.eq.s32.totalorder %s28, 0
      %p100 = por %p98, %p99
      %p101 = scmp.ne.s32.totalorder %s87, %s88
      %p102 = scmp.eq.s32.totalorder %s29, 1
      %p103 = por %p101, %p102
      %p105 = scmp.ne.s32.totalorder %s88, %s104
      %p106 = scmp.eq.s32.totalorder %s29, 0
      %p107 = por %p105, %p106
      %s108 = ssub.s32 %s31, %s45
      %p109 = scmp.eq.s32.totalorder %s108, 0
      %s111 = sadd.s32 %s110, 1
      %s112 = scalar_select %p109, %s110, %s111
      %p115 = pneg %p109
      %p116 = scmp.eq.s32.totalorder %s23, 1
      %p117 = por %p115, %p116
      %p118 = scmp.ne.s32.totalorder %s110, %s113
      %p119 = scmp.eq.s32.totalorder %s23, 0
      %p120 = por %p118, %p119
      %p121 = scmp.ne.s32.totalorder %s110, %s113
      %p122 = scmp.eq.s32.totalorder %s28, 1
      %p123 = por %p121, %p122
      %p124 = scmp.ne.s32.totalorder %s113, %s114
      %p125 = scmp.eq.s32.totalorder %s28, 0
      %p126 = por %p124, %p125
      %p127 = scmp.ne.s32.totalorder %s113, %s114
      %p128 = scmp.eq.s32.totalorder %s29, 1
      %p129 = por %p127, %p128
      %p131 = scmp.ne.s32.totalorder %s114, %s130
      %p132 = scmp.eq.s32.totalorder %s29, 0
      %p133 = por %p131, %p132
      %s134 = ssub.s32 %s30, %s49
      %p135 = scmp.eq.s32.totalorder %s134, 0
      %s137 = sadd.s32 %s136, 1
      %s138 = scalar_select %p135, %s136, %s137
      %p141 = pneg %p135
      %p142 = scmp.eq.s32.totalorder %s23, 1
      %p143 = por %p141, %p142
      %p144 = scmp.ne.s32.totalorder %s136, %s139
      %p145 = scmp.eq.s32.totalorder %s23, 0
      %p146 = por %p144, %p145
      %p147 = scmp.ne.s32.totalorder %s136, %s139
      %p148 = scmp.eq.s32.totalorder %s28, 1
      %p149 = por %p147, %p148
      %p150 = scmp.ne.s32.totalorder %s139, %s140
      %p151 = scmp.eq.s32.totalorder %s28, 0
      %p152 = por %p150, %p151
      %p153 = scmp.ne.s32.totalorder %s139, %s140
      %p154 = scmp.eq.s32.totalorder %s29, 1
      %p155 = por %p153, %p154
      %p157 = scmp.ne.s32.totalorder %s140, %s156
      %p158 = scmp.eq.s32.totalorder %s29, 0
      %p159 = por %p157, %p158
      %s160 = ssub.s32 %s30, %s49
      %p161 = scmp.eq.s32.totalorder %s160, 0
      %s163 = sadd.s32 %s162, 1
      %s164 = scalar_select %p161, %s162, %s163
      %p167 = pneg %p161
      %p168 = scmp.eq.s32.totalorder %s23, 1
      %p169 = por %p167, %p168
      %p170 = scmp.ne.s32.totalorder %s162, %s165
      %p171 = scmp.eq.s32.totalorder %s23, 0
      %p172 = por %p170, %p171
      %p173 = scmp.ne.s32.totalorder %s162, %s165
      %p174 = scmp.eq.s32.totalorder %s28, 1
      %p175 = por %p173, %p174
      %p176 = scmp.ne.s32.totalorder %s165, %s166
      %p177 = scmp.eq.s32.totalorder %s28, 0
      %p178 = por %p176, %p177
      %p179 = scmp.ne.s32.totalorder %s165, %s166
      %p180 = scmp.eq.s32.totalorder %s29, 1
      %p181 = por %p179, %p180
      %p183 = scmp.ne.s32.totalorder %s166, %s182
      %p184 = scmp.eq.s32.totalorder %s29, 0
      %p185 = por %p183, %p184
      %p186 = scmp.le.s32.totalorder 1, %s23
      %p187 = scmp.lt.s32.totalorder %s23, 3
      %p188 = pnand %p186, %p187
      %p189 = pneg %p188
      // Predicated region
      $region9: #{tpu_custom_call.1} parent=5 // pred_check
        _
      $region10: #{tpu_custom_call.1} parent=5 // pred_check_branch
        %191 = sbr.rel (%p188) target = $region12
      $region11: #{tpu_custom_call.1} parent=5 // pred_region
        %s192 = ssub.s32 %s23, 1
        // Predicated region
        $region13: #{tpu_custom_call.1} parent=11 // pred_check
          %p193 = pneg %p126
        $region14: #{tpu_custom_call.1} parent=11 // pred_check_branch
          %195 = sbr.rel (%p193) target = $region16
        $region15: #{tpu_custom_call.1} parent=11 // pred_region
          %s196 = smul.u32 16, %s34
          %s198 = ssub.s32 2048, 2048
          %199 = vsyncadd [#allocation8], %s198
          %s200 = smul.addr %s196, 128
          %s201 = scalar_lea.hbm %s2, %s200
          %s202 = sshll.u32 [#allocation9], 4
          %s203 = int_to_ptr.vmem [resolvable:$true] %s202
          %208 = dma.hbm_to_vmem [thread:$0]  %s201, 2048, %s203, [#allocation8], 128, 128, 8
        $region16: #{tpu_custom_call.1} parent=11 // pred_fallthru
          _
      $region12: #{tpu_custom_call.1} parent=5 // pred_fallthru
        _
      %p209 = scmp.lt.s32.totalorder %s23, 2
      // Predicated region
      $region17: #{tpu_custom_call.1} parent=5 // pred_check
        %p210 = pneg %p209
      $region18: #{tpu_custom_call.1} parent=5 // pred_check_branch
        %212 = sbr.rel (%p210) target = $region20
      $region19: #{tpu_custom_call.1} parent=5 // pred_region
        // Predicated region
        $region21: #{tpu_custom_call.1} parent=19 // pred_check
          %p213 = pneg %p64
        $region22: #{tpu_custom_call.1} parent=19 // pred_check_branch
          %215 = sbr.rel (%p213) target = $region24
        $region23: #{tpu_custom_call.1} parent=19 // pred_region
          %s216 = sand.u32 %s54, 1
          %s217 = scalar_lea.sflag [#allocation5], %s216
          %s218 = sand.u32 %s54, 1
          %s219 = smul.addr %s218, 64
          %s220 = scalar_lea.vmem [#allocation4], %s219
          %s221 = sadd.s32 %s30, %s32
          %s222 = smul.u32 8, %s221
          %s224 = ssub.s32 1024, 1024
          %225 = vsyncadd %s217, %s224
          %s226 = smul.addr %s222, 128
          %s227 = scalar_lea.hbm %s0, %s226
          %s228 = sshll.u32 %s220, 4
          %s229 = int_to_ptr.vmem [resolvable:$true] %s228
          %234 = dma.hbm_to_vmem [thread:$0]  %s227, 1024, %s229, %s217, 128, 128, 8
        $region24: #{tpu_custom_call.1} parent=19 // pred_fallthru
          _
        // Predicated region
        $region25: #{tpu_custom_call.1} parent=19 // pred_check
          %p235 = pneg %p94
        $region26: #{tpu_custom_call.1} parent=19 // pred_check_branch
          %237 = sbr.rel (%p235) target = $region28
        $region27: #{tpu_custom_call.1} parent=19 // pred_region
          %s238 = sand.u32 %s23, 1
          %s239 = scalar_lea.sflag [#allocation8], %s238
          %s240 = sand.u32 %s84, 1
          %s241 = smul.addr %s240, 64
          %s242 = scalar_lea.vmem [#allocation7], %s241
          %s243 = sadd.s32 %s30, %s32
          %s244 = smul.u32 8, %s243
          %s246 = ssub.s32 1024, 1024
          %247 = vsyncadd %s239, %s246
          %s248 = sadd.s32 %s31, %s244
          %s249 = smul.addr %s248, 128
          %s250 = scalar_lea.hbm %s1, %s249
          %s251 = sshll.u32 %s242, 4
          %s252 = int_to_ptr.vmem [resolvable:$true] %s251
          %257 = dma.hbm_to_vmem [thread:$0]  %s250, 1024, %s252, %s239, 128, 128, 8
        $region28: #{tpu_custom_call.1} parent=19 // pred_fallthru
          _
      $region20: #{tpu_custom_call.1} parent=5 // pred_fallthru
        _
      %p258 = scmp.le.s32.totalorder 1, %s23
      %p259 = scmp.lt.s32.totalorder %s23, 3
      %p260 = pnand %p258, %p259
      %p261 = pneg %p260
      // Predicated region
      $region29: #{tpu_custom_call.1} parent=5 // pred_check
        _
      $region30: #{tpu_custom_call.1} parent=5 // pred_check_branch
        %263 = sbr.rel (%p260) target = $region32
      $region31: #{tpu_custom_call.1} parent=5 // pred_region
        %s264 = ssub.s32 %s23, 1
        %s265 = sand.u32 %s57, 1
        %s266 = scalar_lea.sflag [#allocation5], %s265
        %s267 = sand.u32 %s57, 1
        %s268 = smul.addr %s267, 64
        %s269 = scalar_lea.vmem [#allocation4], %s268
        // Predicated region
        $region33: #{tpu_custom_call.1} parent=31 // pred_check
          %p270 = pneg %p70
        $region34: #{tpu_custom_call.1} parent=31 // pred_check_branch
          %272 = sbr.rel (%p270) target = $region36
        $region35: #{tpu_custom_call.1} parent=31 // pred_region
          %273 = dma.done %s266, 1024
        $region36: #{tpu_custom_call.1} parent=31 // pred_fallthru
          _
        %s274 = sand.u32 %s28, 1
        %s275 = scalar_lea.sflag [#allocation8], %s274
        %s276 = sand.u32 %s87, 1
        %s277 = smul.addr %s276, 64
        %s278 = scalar_lea.vmem [#allocation7], %s277
        // Predicated region
        $region37: #{tpu_custom_call.1} parent=31 // pred_check
          %p279 = pneg %p100
        $region38: #{tpu_custom_call.1} parent=31 // pred_check_branch
          %281 = sbr.rel (%p279) target = $region40
        $region39: #{tpu_custom_call.1} parent=31 // pred_region
          %282 = dma.done %s275, 1024
        $region40: #{tpu_custom_call.1} parent=31 // pred_fallthru
          _
        // Predicated region
        $region41: #{tpu_custom_call.1} parent=31 // pred_check
          %p283 = pneg %p126
        $region42: #{tpu_custom_call.1} parent=31 // pred_check_branch
          %285 = sbr.rel (%p283) target = $region44
        $region43: #{tpu_custom_call.1} parent=31 // pred_region
          %286 = dma.done [#allocation8], 2048
        $region44: #{tpu_custom_call.1} parent=31 // pred_fallthru
          _
        %s287 = sand.u32 %s57, 1
        %s288 = scalar_lea.sflag [#allocation5], %s287
        %s289 = sand.u32 %s57, 1
        %s290 = smul.addr %s289, 64
        %s291 = scalar_lea.vmem [#allocation4], %s290
        %p292 = pneg %p70
        %p293 = pneg %p67
        %s294 = sand.u32 %s28, 1
        %s295 = scalar_lea.sflag [#allocation8], %s294
        %s296 = sand.u32 %s87, 1
        %s297 = smul.addr %s296, 64
        %s298 = scalar_lea.vmem [#allocation7], %s297
        %p299 = pneg %p100
        %p300 = pneg %p97
        %p301 = pneg %p126
        %p302 = pneg %p123
        %p303 = pneg %p152
        %p304 = pneg %p149
        %s305 = sand.u32 %s139, 1
        %s306 = scalar_lea.sflag [#allocation6], %s305
        %s307 = sand.u32 %s139, 1
        %s308 = smul.addr %s307, 128
        %s309 = scalar_lea.vmem [#allocation10], %s308
        %p310 = pneg %p178
        %p311 = pneg %p175
        %s312 = sand.u32 %s165, 1
        %s313 = scalar_lea.sflag [#allocation12], %s312
        %s314 = sand.u32 %s165, 1
        %s315 = smul.addr %s314, 8
        %s316 = scalar_lea.vmem [#allocation11], %s315
        %s317 = sadd.s32 %s33, %s35
        %s318 = smul.u32 8, %s317
        %s319 = sadd.s32 %s33, %s35
        %s320 = smul.u32 8, %s319
        %s321 = smul.u32 16, %s34
        %p322 = scmp.eq.s32.totalorder %s34, 0
        %p323 = scmp.eq.s32.totalorder %s35, 0
        %p324 = pnand %p322, %p323
        %p325 = pneg %p324
        // Predicated region
        $region45: #{tpu_custom_call.1} parent=31 // pred_check
          _
        $region46: #{tpu_custom_call.1} parent=31 // pred_check_branch
          %327 = sbr.rel (%p324) target = $region48
        $region47: #{tpu_custom_call.1} parent=31 // pred_region
          %328 = vst [vmem:[#allocation2] sm:$0xff] 0.0
          %329 = vst [vmem:[#allocation2 + $0x8] sm:$0xff] 0.0
          %330 = vst [vmem:[#allocation2 + $0x10] sm:$0xff] 0.0
          %331 = vst [vmem:[#allocation2 + $0x18] sm:$0xff] 0.0
          %332 = vst [vmem:[#allocation2 + $0x20] sm:$0xff] 0.0
          %333 = vst [vmem:[#allocation2 + $0x28] sm:$0xff] 0.0
          %334 = vst [vmem:[#allocation2 + $0x30] sm:$0xff] 0.0
          %335 = vst [vmem:[#allocation2 + $0x38] sm:$0xff] 0.0
          %336 = vst [vmem:[#allocation2 + $0x40] sm:$0xff] 0.0
          %337 = vst [vmem:[#allocation2 + $0x48] sm:$0xff] 0.0
          %338 = vst [vmem:[#allocation2 + $0x50] sm:$0xff] 0.0
          %339 = vst [vmem:[#allocation2 + $0x58] sm:$0xff] 0.0
          %340 = vst [vmem:[#allocation2 + $0x60] sm:$0xff] 0.0
          %341 = vst [vmem:[#allocation2 + $0x68] sm:$0xff] 0.0
          %342 = vst [vmem:[#allocation2 + $0x70] sm:$0xff] 0.0
          %343 = vst [vmem:[#allocation2 + $0x78] sm:$0xff] 0.0
          %344 = vst [vmem:[#allocation3] sm:$0xff] 0.0
        $region48: #{tpu_custom_call.1} parent=31 // pred_fallthru
          _
        %v345 = vld [vmem:[%s269] sm:$0xff]
        %v346 = vld [vmem:[%s269 + $0x8] sm:$0xff]
        %v347 = vld [vmem:[%s269 + $0x10] sm:$0xff]
        %v348 = vld [vmem:[%s269 + $0x18] sm:$0xff]
        %v349 = vld [vmem:[%s269 + $0x20] sm:$0xff]
        %v350 = vld [vmem:[%s269 + $0x28] sm:$0xff]
        %v351 = vld [vmem:[%s269 + $0x30] sm:$0xff]
        %v352 = vld [vmem:[%s269 + $0x38] sm:$0xff]
        // Predicated region
        $region49: #{tpu_custom_call.1} parent=31 // pred_check
          %p353 = pneg %p322
        $region50: #{tpu_custom_call.1} parent=31 // pred_check_branch
          %355 = sbr.rel (%p353) target = $region52
        $region51: #{tpu_custom_call.1} parent=31 // pred_region
          %v356 = vld [vmem:[#allocation2] sm:$0xff]
          %v357 = vld [vmem:[#allocation2 + $0x8] sm:$0xff]
          %v358 = vld [vmem:[#allocation2 + $0x10] sm:$0xff]
          %v359 = vld [vmem:[#allocation2 + $0x18] sm:$0xff]
          %v360 = vld [vmem:[#allocation2 + $0x20] sm:$0xff]
          %v361 = vld [vmem:[#allocation2 + $0x28] sm:$0xff]
          %v362 = vld [vmem:[#allocation2 + $0x30] sm:$0xff]
          %v363 = vld [vmem:[#allocation2 + $0x38] sm:$0xff]
          %v364 = vld [vmem:[#allocation2 + $0x40] sm:$0xff]
          %v365 = vld [vmem:[#allocation2 + $0x48] sm:$0xff]
          %v366 = vld [vmem:[#allocation2 + $0x50] sm:$0xff]
          %v367 = vld [vmem:[#allocation2 + $0x58] sm:$0xff]
          %v368 = vld [vmem:[#allocation2 + $0x60] sm:$0xff]
          %v369 = vld [vmem:[#allocation2 + $0x68] sm:$0xff]
          %v370 = vld [vmem:[#allocation2 + $0x70] sm:$0xff]
          %v371 = vld [vmem:[#allocation2 + $0x78] sm:$0xff]
          %372 = vxpose.xlu0.b32.start [1/16] %v345, 128
          %373 = vxpose.xlu0.b32.cont [2/16] %v346, 128
          %374 = vxpose.xlu0.b32.cont [3/16] %v347, 128
          %375 = vxpose.xlu0.b32.cont [4/16] %v348, 128
          %376 = vxpose.xlu0.b32.cont [5/16] %v349, 128
          %377 = vxpose.xlu0.b32.cont [6/16] %v350, 128
          %378 = vxpose.xlu0.b32.cont [7/16] %v351, 128
          %379 = vxpose.xlu0.b32.cont [8/16] %v352, 128
          %380 = vxpose.xlu0.b32.cont [9/16] 0.0, 128
          %381 = vxpose.xlu0.b32.cont [10/16] 0.0, 128
          %382 = vxpose.xlu0.b32.cont [11/16] 0.0, 128
          %383 = vxpose.xlu0.b32.cont [12/16] 0.0, 128
          %384 = vxpose.xlu0.b32.cont [13/16] 0.0, 128
          %385 = vxpose.xlu0.b32.cont [14/16] 0.0, 128
          %386 = vxpose.xlu0.b32.cont [15/16] 0.0, 128
          %387 = vxpose.xlu0.b32.end [16/16] 0.0, 128
          %v388 = vpop.trf.xlu0
          %v389 = vpop.trf.xlu0
          %v390 = vpop.trf.xlu0
          %v391 = vpop.trf.xlu0
          %v392 = vpop.trf.xlu0
          %v393 = vpop.trf.xlu0
          %v394 = vpop.trf.xlu0
          %v395 = vpop.trf.xlu0
          %v396 = vpop.trf.xlu0
          %v397 = vpop.trf.xlu0
          %v398 = vpop.trf.xlu0
          %v399 = vpop.trf.xlu0
          %v400 = vpop.trf.xlu0
          %v401 = vpop.trf.xlu0
          %v402 = vpop.trf.xlu0
          %v403 = vpop.trf.xlu0
          %vm404 = vcmask 523264
          %v406 = vsel %vm404, %v388, 0
          %v409 = vsel %vm404, %v389, 0
          %v412 = vsel %vm404, %v390, 0
          %v415 = vsel %vm404, %v391, 0
          %v418 = vsel %vm404, %v392, 0
          %v421 = vsel %vm404, %v393, 0
          %v424 = vsel %vm404, %v394, 0
          %v427 = vsel %vm404, %v395, 0
          %v430 = vsel %vm404, %v396, 0
          %v433 = vsel %vm404, %v397, 0
          %v436 = vsel %vm404, %v398, 0
          %v439 = vsel %vm404, %v399, 0
          %v442 = vsel %vm404, %v400, 0
          %v445 = vsel %vm404, %v401, 0
          %v448 = vsel %vm404, %v402, 0
          %v451 = vsel %vm404, %v403, 0
          %453 = vmatprep.subr.mxu0 0.0
          %454 = vmatpush1.msra.mxu0 %v345
          %455 = vmatprep.subr.mxu0 0.0
          %456 = vmatpush1.msra.mxu0 %v346
          %457 = vmatprep.subr.mxu0 0.0
          %458 = vmatpush1.msra.mxu0 %v347
          %459 = vmatprep.subr.mxu0 0.0
          %460 = vmatpush1.msra.mxu0 %v348
          %461 = vmatprep.subr.mxu0 0.0
          %462 = vmatpush1.msra.mxu0 %v349
          %463 = vmatprep.subr.mxu0 0.0
          %464 = vmatpush1.msra.mxu0 %v350
          %465 = vmatprep.subr.mxu0 0.0
          %466 = vmatpush1.msra.mxu0 %v351
          %467 = vmatprep.subr.mxu0 0.0
          %468 = vmatpush1.msra.mxu0 %v352
          %469 = vmatprep.subr.mxu0 0.0
          %470 = vmatpush1.msra.mxu0 0.0
          %471 = vmatprep.subr.mxu0 0.0
          %472 = vmatpush1.msra.mxu0 0.0
          %473 = vmatprep.subr.mxu0 0.0
          %474 = vmatpush1.msra.mxu0 0.0
          %475 = vmatprep.subr.mxu0 0.0
          %476 = vmatpush1.msra.mxu0 0.0
          %477 = vmatprep.subr.mxu0 0.0
          %478 = vmatpush1.msra.mxu0 0.0
          %479 = vmatprep.subr.mxu0 0.0
          %480 = vmatpush1.msra.mxu0 0.0
          %481 = vmatprep.subr.mxu0 0.0
          %482 = vmatpush1.msra.mxu0 0.0
          %483 = vmatprep.subr.mxu0 0.0
          %484 = vmatpush1.msra.mxu0 0.0
          %485 = vmatprep.subr.mxu0 0.0
          %486 = vmatpush1.msra.mxu0 0.0
          %487 = vmatprep.subr.mxu0 0.0
          %488 = vmatpush1.msra.mxu0 0.0
          %489 = vmatprep.subr.mxu0 0.0
          %490 = vmatpush1.msra.mxu0 0.0
          %491 = vmatprep.subr.mxu0 0.0
          %492 = vmatpush1.msra.mxu0 0.0
          %493 = vmatprep.subr.mxu0 0.0
          %494 = vmatpush1.msra.mxu0 0.0
          %495 = vmatprep.subr.mxu0 0.0
          %496 = vmatpush1.msra.mxu0 0.0
          %497 = vmatprep.subr.mxu0 0.0
          %498 = vmatpush1.msra.mxu0 0.0
          %499 = vmatprep.subr.mxu0 0.0
          %500 = vmatpush1.msra.mxu0 0.0
          %501 = vmatprep.subr.mxu0 0.0
          %502 = vmatpush1.msra.mxu0 0.0
          %503 = vmatprep.subr.mxu0 0.0
          %504 = vmatpush1.msra.mxu0 0.0
          %505 = vmatprep.subr.mxu0 0.0
          %506 = vmatpush1.msra.mxu0 0.0
          %507 = vmatprep.subr.mxu0 0.0
          %508 = vmatpush1.msra.mxu0 0.0
          %509 = vmatprep.subr.mxu0 0.0
          %510 = vmatpush1.msra.mxu0 0.0
          %511 = vmatprep.subr.mxu0 0.0
          %512 = vmatpush1.msra.mxu0 0.0
          %513 = vmatprep.subr.mxu0 0.0
          %514 = vmatpush1.msra.mxu0 0.0
          %515 = vmatprep.subr.mxu0 0.0
          %516 = vmatpush1.msra.mxu0 0.0
          %517 = vmatprep.mubr.f32.mxu0 0.0
          %518 = vmatmul.mubr.f32.gmra.mrb[0].mxu0 %v406
          %v519 = vpop.f32.mrb[0].mxu0
          %v520 = vadd.f32 0.0, %v519
          %v521 = vpop.f32.mrb[0].mxu0
          %522 = vmatprep.mubr.f32.mxu0 0.0
          %523 = vmatmul.mubr.f32.gmra.mrb[0].mxu0 %v409
          %v524 = vpop.f32.mrb[0].mxu0
          %v525 = vadd.f32 0.0, %v524
          %v526 = vpop.f32.mrb[0].mxu0
          %527 = vmatprep.mubr.f32.mxu0 0.0
          %528 = vmatmul.mubr.f32.gmra.mrb[0].mxu0 %v412
          %v529 = vpop.f32.mrb[0].mxu0
          %v530 = vadd.f32 0.0, %v529
          %v531 = vpop.f32.mrb[0].mxu0
          %532 = vmatprep.mubr.f32.mxu0 0.0
          %533 = vmatmul.mubr.f32.gmra.mrb[0].mxu0 %v415
          %v534 = vpop.f32.mrb[0].mxu0
          %v535 = vadd.f32 0.0, %v534
          %v536 = vpop.f32.mrb[0].mxu0
          %537 = vmatprep.mubr.f32.mxu0 0.0
          %538 = vmatmul.mubr.f32.gmra.mrb[0].mxu0 %v418
          %v539 = vpop.f32.mrb[0].mxu0
          %v540 = vadd.f32 0.0, %v539
          %v541 = vpop.f32.mrb[0].mxu0
          %542 = vmatprep.mubr.f32.mxu0 0.0
          %543 = vmatmul.mubr.f32.gmra.mrb[0].mxu0 %v421
          %v544 = vpop.f32.mrb[0].mxu0
          %v545 = vadd.f32 0.0, %v544
          %v546 = vpop.f32.mrb[0].mxu0
          %547 = vmatprep.mubr.f32.mxu0 0.0
          %548 = vmatmul.mubr.f32.gmra.mrb[0].mxu0 %v424
          %v549 = vpop.f32.mrb[0].mxu0
          %v550 = vadd.f32 0.0, %v549
          %v551 = vpop.f32.mrb[0].mxu0
          %552 = vmatprep.mubr.f32.mxu0 0.0
          %553 = vmatmul.mubr.f32.gmra.mrb[0].mxu0 %v427
          %v554 = vpop.f32.mrb[0].mxu0
          %v555 = vadd.f32 0.0, %v554
          %v556 = vpop.f32.mrb[0].mxu0
          %557 = vmatprep.mubr.f32.mxu0 0.0
          %558 = vmatmul.mubr.f32.gmra.mrb[0].mxu0 %v430
          %v559 = vpop.f32.mrb[0].mxu0
          %v560 = vadd.f32 0.0, %v559
          %v561 = vpop.f32.mrb[0].mxu0
          %562 = vmatprep.mubr.f32.mxu0 0.0
          %563 = vmatmul.mubr.f32.gmra.mrb[0].mxu0 %v433
          %v564 = vpop.f32.mrb[0].mxu0
          %v565 = vadd.f32 0.0, %v564
          %v566 = vpop.f32.mrb[0].mxu0
          %567 = vmatprep.mubr.f32.mxu0 0.0
          %568 = vmatmul.mubr.f32.gmra.mrb[0].mxu0 %v436
          %v569 = vpop.f32.mrb[0].mxu0
          %v570 = vadd.f32 0.0, %v569
          %v571 = vpop.f32.mrb[0].mxu0
          %572 = vmatprep.mubr.f32.mxu0 0.0
          %573 = vmatmul.mubr.f32.gmra.mrb[0].mxu0 %v439
          %v574 = vpop.f32.mrb[0].mxu0
          %v575 = vadd.f32 0.0, %v574
          %v576 = vpop.f32.mrb[0].mxu0
          %577 = vmatprep.mubr.f32.mxu0 0.0
          %578 = vmatmul.mubr.f32.gmra.mrb[0].mxu0 %v442
          %v579 = vpop.f32.mrb[0].mxu0
          %v580 = vadd.f32 0.0, %v579
          %v581 = vpop.f32.mrb[0].mxu0
          %582 = vmatprep.mubr.f32.mxu0 0.0
          %583 = vmatmul.mubr.f32.gmra.mrb[0].mxu0 %v445
          %v584 = vpop.f32.mrb[0].mxu0
          %v585 = vadd.f32 0.0, %v584
          %v586 = vpop.f32.mrb[0].mxu0
          %587 = vmatprep.mubr.f32.mxu0 0.0
          %588 = vmatmul.mubr.f32.gmra.mrb[0].mxu0 %v448
          %v589 = vpop.f32.mrb[0].mxu0
          %v590 = vadd.f32 0.0, %v589
          %v591 = vpop.f32.mrb[0].mxu0
          %592 = vmatprep.mubr.f32.mxu0 0.0
          %593 = vmatmul.mubr.f32.gmra.mrb[0].mxu0 %v451
          %v594 = vpop.f32.mrb[0].mxu0
          %v595 = vadd.f32 0.0, %v594
          %v596 = vpop.f32.mrb[0].mxu0
          %597 = vdwg.mxu0
          %v598 = vadd.f32 %v356, %v520
          %v599 = vadd.f32 %v357, %v525
          %v600 = vadd.f32 %v358, %v530
          %v601 = vadd.f32 %v359, %v535
          %v602 = vadd.f32 %v360, %v540
          %v603 = vadd.f32 %v361, %v545
          %v604 = vadd.f32 %v362, %v550
          %v605 = vadd.f32 %v363, %v555
          %v606 = vadd.f32 %v364, %v560
          %v607 = vadd.f32 %v365, %v565
          %v608 = vadd.f32 %v366, %v570
          %v609 = vadd.f32 %v367, %v575
          %v610 = vadd.f32 %v368, %v580
          %v611 = vadd.f32 %v369, %v585
          %v612 = vadd.f32 %v370, %v590
          %v613 = vadd.f32 %v371, %v595
          %614 = vst [vmem:[#allocation2] sm:$0xff] %v598
          %615 = vst [vmem:[#allocation2 + $0x8] sm:$0xff] %v599
          %616 = vst [vmem:[#allocation2 + $0x10] sm:$0xff] %v600
          %617 = vst [vmem:[#allocation2 + $0x18] sm:$0xff] %v601
          %618 = vst [vmem:[#allocation2 + $0x20] sm:$0xff] %v602
          %619 = vst [vmem:[#allocation2 + $0x28] sm:$0xff] %v603
          %620 = vst [vmem:[#allocation2 + $0x30] sm:$0xff] %v604
          %621 = vst [vmem:[#allocation2 + $0x38] sm:$0xff] %v605
          %622 = vst [vmem:[#allocation2 + $0x40] sm:$0xff] %v606
          %623 = vst [vmem:[#allocation2 + $0x48] sm:$0xff] %v607
          %624 = vst [vmem:[#allocation2 + $0x50] sm:$0xff] %v608
          %625 = vst [vmem:[#allocation2 + $0x58] sm:$0xff] %v609
          %626 = vst [vmem:[#allocation2 + $0x60] sm:$0xff] %v610
          %627 = vst [vmem:[#allocation2 + $0x68] sm:$0xff] %v611
          %628 = vst [vmem:[#allocation2 + $0x70] sm:$0xff] %v612
          %629 = vst [vmem:[#allocation2 + $0x78] sm:$0xff] %v613
          %v630 = vld [vmem:[#allocation3 + $0x1] sm:$0x1]
          %v631 = vmul.f32 %v345, %v345
          %v632 = vmul.f32 %v346, %v346
          %v633 = vmul.f32 %v347, %v347
          %v634 = vmul.f32 %v348, %v348
          %v635 = vmul.f32 %v349, %v349
          %v636 = vmul.f32 %v350, %v350
          %v637 = vmul.f32 %v351, %v351
          %v638 = vmul.f32 %v352, %v352
          %v639 = vadd.f32 %v631, %v632
          %v640 = vadd.f32 %v639, %v633
          %v641 = vadd.f32 %v640, %v634
          %v642 = vadd.f32 %v641, %v635
          %v643 = vadd.f32 %v642, %v636
          %v644 = vadd.f32 %v643, %v637
          %v645 = vadd.f32 %v644, %v638
          %v646 = vrot.slane %v645, 4
          %v647 = vadd.f32 %v645, %v646
          %v648 = vrot.slane %v647, 2
          %v649 = vadd.f32 %v647, %v648
          %v650 = vrot.slane %v649, 1
          %v651 = vadd.f32 %v649, %v650
          %v652 = vadd.f32 %v630, %v651
          %653 = vst [vmem:[#allocation3 + $0x1] sm:$0x1] %v652
        $region52: #{tpu_custom_call.1} parent=31 // pred_fallthru
          _
        %v654 = vld [vmem:[%s278] sm:$0xff]
        %v655 = vld [vmem:[%s278 + $0x8] sm:$0xff]
        %v656 = vld [vmem:[%s278 + $0x10] sm:$0xff]
        %v657 = vld [vmem:[%s278 + $0x18] sm:$0xff]
        %v658 = vld [vmem:[%s278 + $0x20] sm:$0xff]
        %v659 = vld [vmem:[%s278 + $0x28] sm:$0xff]
        %v660 = vld [vmem:[%s278 + $0x30] sm:$0xff]
        %v661 = vld [vmem:[%s278 + $0x38] sm:$0xff]
        %v662 = vld [vmem:[#allocation9] sm:$0xff]
        %v663 = vld [vmem:[#allocation9 + $0x8] sm:$0xff]
        %v664 = vld [vmem:[#allocation9 + $0x10] sm:$0xff]
        %v665 = vld [vmem:[#allocation9 + $0x18] sm:$0xff]
        %v666 = vld [vmem:[#allocation9 + $0x20] sm:$0xff]
        %v667 = vld [vmem:[#allocation9 + $0x28] sm:$0xff]
        %v668 = vld [vmem:[#allocation9 + $0x30] sm:$0xff]
        %v669 = vld [vmem:[#allocation9 + $0x38] sm:$0xff]
        %v670 = vld [vmem:[#allocation9 + $0x40] sm:$0xff]
        %v671 = vld [vmem:[#allocation9 + $0x48] sm:$0xff]
        %v672 = vld [vmem:[#allocation9 + $0x50] sm:$0xff]
        %v673 = vld [vmem:[#allocation9 + $0x58] sm:$0xff]
        %v674 = vld [vmem:[#allocation9 + $0x60] sm:$0xff]
        %v675 = vld [vmem:[#allocation9 + $0x68] sm:$0xff]
        %v676 = vld [vmem:[#allocation9 + $0x70] sm:$0xff]
        %v677 = vld [vmem:[#allocation9 + $0x78] sm:$0xff]
        %678 = vmatprep.subr.mxu0 0.0
        %679 = vmatpush1.msra.mxu0 %v662
        %680 = vmatprep.subr.mxu0 0.0
        %681 = vmatpush1.msra.mxu0 %v663
        %682 = vmatprep.subr.mxu0 0.0
        %683 = vmatpush1.msra.mxu0 %v664
        %684 = vmatprep.subr.mxu0 0.0
        %685 = vmatpush1.msra.mxu0 %v665
        %686 = vmatprep.subr.mxu0 0.0
        %687 = vmatpush1.msra.mxu0 %v666
        %688 = vmatprep.subr.mxu0 0.0
        %689 = vmatpush1.msra.mxu0 %v667
        %690 = vmatprep.subr.mxu0 0.0
        %691 = vmatpush1.msra.mxu0 %v668
        %692 = vmatprep.subr.mxu0 0.0
        %693 = vmatpush1.msra.mxu0 %v669
        %694 = vmatprep.subr.mxu0 0.0
        %695 = vmatpush1.msra.mxu0 %v670
        %696 = vmatprep.subr.mxu0 0.0
        %697 = vmatpush1.msra.mxu0 %v671
        %698 = vmatprep.subr.mxu0 0.0
        %699 = vmatpush1.msra.mxu0 %v672
        %700 = vmatprep.subr.mxu0 0.0
        %701 = vmatpush1.msra.mxu0 %v673
        %702 = vmatprep.subr.mxu0 0.0
        %703 = vmatpush1.msra.mxu0 %v674
        %704 = vmatprep.subr.mxu0 0.0
        %705 = vmatpush1.msra.mxu0 %v675
        %706 = vmatprep.subr.mxu0 0.0
        %707 = vmatpush1.msra.mxu0 %v676
        %708 = vmatprep.subr.mxu0 0.0
        %709 = vmatpush1.msra.mxu0 %v677
        %710 = vmatprep.subr.mxu0 0.0
        %711 = vmatpush1.msra.mxu0 0.0
        %712 = vmatprep.subr.mxu0 0.0
        %713 = vmatpush1.msra.mxu0 0.0
        %714 = vmatprep.subr.mxu0 0.0
        %715 = vmatpush1.msra.mxu0 0.0
        %716 = vmatprep.subr.mxu0 0.0
        %717 = vmatpush1.msra.mxu0 0.0
        %718 = vmatprep.subr.mxu0 0.0
        %719 = vmatpush1.msra.mxu0 0.0
        %720 = vmatprep.subr.mxu0 0.0
        %721 = vmatpush1.msra.mxu0 0.0
        %722 = vmatprep.subr.mxu0 0.0
        %723 = vmatpush1.msra.mxu0 0.0
        %724 = vmatprep.subr.mxu0 0.0
        %725 = vmatpush1.msra.mxu0 0.0
        %726 = vmatprep.subr.mxu0 0.0
        %727 = vmatpush1.msra.mxu0 0.0
        %728 = vmatprep.subr.mxu0 0.0
        %729 = vmatpush1.msra.mxu0 0.0
        %730 = vmatprep.subr.mxu0 0.0
        %731 = vmatpush1.msra.mxu0 0.0
        %732 = vmatprep.subr.mxu0 0.0
        %733 = vmatpush1.msra.mxu0 0.0
        %734 = vmatprep.subr.mxu0 0.0
        %735 = vmatpush1.msra.mxu0 0.0
        %736 = vmatprep.subr.mxu0 0.0
        %737 = vmatpush1.msra.mxu0 0.0
        %738 = vmatprep.subr.mxu0 0.0
        %739 = vmatpush1.msra.mxu0 0.0
        %740 = vmatprep.subr.mxu0 0.0
        %741 = vmatpush1.msra.mxu0 0.0
        %742 = vmatprep.mubr.f32.mxu0 0.0
        %743 = vmatmul.mubr.f32.gmra.mrb[0].mxu0 %v654
        %v744 = vpop.f32.mrb[0].mxu0
        %v745 = vadd.f32 0.0, %v744
        %v746 = vpop.f32.mrb[0].mxu0
        %747 = vmatprep.mubr.f32.mxu0 0.0
        %748 = vmatmul.mubr.f32.gmra.mrb[0].mxu0 %v655
        %v749 = vpop.f32.mrb[0].mxu0
        %v750 = vadd.f32 0.0, %v749
        %v751 = vpop.f32.mrb[0].mxu0
        %752 = vmatprep.mubr.f32.mxu0 0.0
        %753 = vmatmul.mubr.f32.gmra.mrb[0].mxu0 %v656
        %v754 = vpop.f32.mrb[0].mxu0
        %v755 = vadd.f32 0.0, %v754
        %v756 = vpop.f32.mrb[0].mxu0
        %757 = vmatprep.mubr.f32.mxu0 0.0
        %758 = vmatmul.mubr.f32.gmra.mrb[0].mxu0 %v657
        %v759 = vpop.f32.mrb[0].mxu0
        %v760 = vadd.f32 0.0, %v759
        %v761 = vpop.f32.mrb[0].mxu0
        %762 = vmatprep.mubr.f32.mxu0 0.0
        %763 = vmatmul.mubr.f32.gmra.mrb[0].mxu0 %v658
        %v764 = vpop.f32.mrb[0].mxu0
        %v765 = vadd.f32 0.0, %v764
        %v766 = vpop.f32.mrb[0].mxu0
        %767 = vmatprep.mubr.f32.mxu0 0.0
        %768 = vmatmul.mubr.f32.gmra.mrb[0].mxu0 %v659
        %v769 = vpop.f32.mrb[0].mxu0
        %v770 = vadd.f32 0.0, %v769
        %v771 = vpop.f32.mrb[0].mxu0
        %772 = vmatprep.mubr.f32.mxu0 0.0
        %773 = vmatmul.mubr.f32.gmra.mrb[0].mxu0 %v660
        %v774 = vpop.f32.mrb[0].mxu0
        %v775 = vadd.f32 0.0, %v774
        %v776 = vpop.f32.mrb[0].mxu0
        %777 = vmatprep.mubr.f32.mxu0 0.0
        %778 = vmatmul.mubr.f32.gmra.mrb[0].mxu0 %v661
        %v779 = vpop.f32.mrb[0].mxu0
        %v780 = vadd.f32 0.0, %v779
        %v781 = vpop.f32.mrb[0].mxu0
        %782 = vdwg.mxu0
        %v783 = vld [vmem:[#allocation3] sm:$0x1]
        %v784 = vmul.f32 %v345, %v745
        %v785 = vmul.f32 %v346, %v750
        %v786 = vmul.f32 %v347, %v755
        %v787 = vmul.f32 %v348, %v760
        %v788 = vmul.f32 %v349, %v765
        %v789 = vmul.f32 %v350, %v770
        %v790 = vmul.f32 %v351, %v775
        %v791 = vmul.f32 %v352, %v780
        %v792 = vadd.f32 %v784, %v785
        %v793 = vadd.f32 %v792, %v786
        %v794 = vadd.f32 %v793, %v787
        %v795 = vadd.f32 %v794, %v788
        %v796 = vadd.f32 %v795, %v789
        %v797 = vadd.f32 %v796, %v790
        %v798 = vadd.f32 %v797, %v791
        %v799 = vrot.slane %v798, 4
        %v800 = vadd.f32 %v798, %v799
        %v801 = vrot.slane %v800, 2
        %v802 = vadd.f32 %v800, %v801
        %v803 = vrot.slane %v802, 1
        %v804 = vadd.f32 %v802, %v803
        %v805 = vadd.f32 %v783, %v804
        %806 = vst [vmem:[#allocation3] sm:$0x1] %v805
        // Predicated region
        $region53: #{tpu_custom_call.1} parent=31 // pred_check
          _
        $region54: #{tpu_custom_call.1} parent=31 // pred_check_branch
          %808 = sbr.rel (%p324) target = $region56
        $region55: #{tpu_custom_call.1} parent=31 // pred_region
          %v809 = vld [vmem:[#allocation2] sm:$0xff]
          %v810 = vld [vmem:[#allocation2 + $0x8] sm:$0xff]
          %v811 = vld [vmem:[#allocation2 + $0x10] sm:$0xff]
          %v812 = vld [vmem:[#allocation2 + $0x18] sm:$0xff]
          %v813 = vld [vmem:[#allocation2 + $0x20] sm:$0xff]
          %v814 = vld [vmem:[#allocation2 + $0x28] sm:$0xff]
          %v815 = vld [vmem:[#allocation2 + $0x30] sm:$0xff]
          %v816 = vld [vmem:[#allocation2 + $0x38] sm:$0xff]
          %v817 = vld [vmem:[#allocation2 + $0x40] sm:$0xff]
          %v818 = vld [vmem:[#allocation2 + $0x48] sm:$0xff]
          %v819 = vld [vmem:[#allocation2 + $0x50] sm:$0xff]
          %v820 = vld [vmem:[#allocation2 + $0x58] sm:$0xff]
          %v821 = vld [vmem:[#allocation2 + $0x60] sm:$0xff]
          %v822 = vld [vmem:[#allocation2 + $0x68] sm:$0xff]
          %v823 = vld [vmem:[#allocation2 + $0x70] sm:$0xff]
          %v824 = vld [vmem:[#allocation2 + $0x78] sm:$0xff]
          %825 = vst [vmem:[%s309] sm:$0xff] %v809
          %826 = vst [vmem:[%s309 + $0x8] sm:$0xff] %v810
          %827 = vst [vmem:[%s309 + $0x10] sm:$0xff] %v811
          %828 = vst [vmem:[%s309 + $0x18] sm:$0xff] %v812
          %829 = vst [vmem:[%s309 + $0x20] sm:$0xff] %v813
          %830 = vst [vmem:[%s309 + $0x28] sm:$0xff] %v814
          %831 = vst [vmem:[%s309 + $0x30] sm:$0xff] %v815
          %832 = vst [vmem:[%s309 + $0x38] sm:$0xff] %v816
          %833 = vst [vmem:[%s309 + $0x40] sm:$0xff] %v817
          %834 = vst [vmem:[%s309 + $0x48] sm:$0xff] %v818
          %835 = vst [vmem:[%s309 + $0x50] sm:$0xff] %v819
          %836 = vst [vmem:[%s309 + $0x58] sm:$0xff] %v820
          %837 = vst [vmem:[%s309 + $0x60] sm:$0xff] %v821
          %838 = vst [vmem:[%s309 + $0x68] sm:$0xff] %v822
          %839 = vst [vmem:[%s309 + $0x70] sm:$0xff] %v823
          %840 = vst [vmem:[%s309 + $0x78] sm:$0xff] %v824
          %v841 = vld [vmem:[#allocation3] sm:$0xff]
          %842 = vst [vmem:[%s316] sm:$0xff] %v841
        $region56: #{tpu_custom_call.1} parent=31 // pred_fallthru
          _
        %s843 = sand.u32 %s139, 1
        %s844 = scalar_lea.sflag [#allocation6], %s843
        %s845 = sand.u32 %s139, 1
        %s846 = smul.addr %s845, 128
        %s847 = scalar_lea.vmem [#allocation10], %s846
        %s848 = sand.u32 %s165, 1
        %s849 = scalar_lea.sflag [#allocation12], %s848
        %s850 = sand.u32 %s165, 1
        %s851 = smul.addr %s850, 8
        %s852 = scalar_lea.vmem [#allocation11], %s851
        // Predicated region
        $region57: #{tpu_custom_call.1} parent=31 // pred_check
          %p853 = pneg %p149
        $region58: #{tpu_custom_call.1} parent=31 // pred_check_branch
          %855 = sbr.rel (%p853) target = $region60
        $region59: #{tpu_custom_call.1} parent=31 // pred_region
          %s857 = ssub.s32 2048, 2048
          %858 = vsyncadd %s844, %s857
          %s859 = smul.addr %s33, 16
          %s860 = smul.addr %s859, 128
          %s861 = scalar_lea.hbm %s3, %s860
          %s862 = sshll.u32 %s847, 4
          %s863 = int_to_ptr.vmem [resolvable:$true] %s862
          %868 = dma.vmem_to_hbm [thread:$0]  %s863, 2048, %s861, %s844, 128, 128, 8
        $region60: #{tpu_custom_call.1} parent=31 // pred_fallthru
          _
        // Predicated region
        $region61: #{tpu_custom_call.1} parent=31 // pred_check
          %p869 = pneg %p175
        $region62: #{tpu_custom_call.1} parent=31 // pred_check_branch
          %871 = sbr.rel (%p869) target = $region64
        $region63: #{tpu_custom_call.1} parent=31 // pred_region
          %s873 = ssub.s32 128, 128
          %874 = vsyncadd %s849, %s873
          %s875 = smul.addr %s33, 128
          %s876 = scalar_lea.hbm %s4, %s875
          %s878 = sshll.u32 %s852, 4
          %s879 = int_to_ptr.vmem [resolvable:$true] %s878
          %881 = dma.vmem_to_hbm [thread:$0]  %s879, 128, %s876, %s849
        $region64: #{tpu_custom_call.1} parent=31 // pred_fallthru
          _
      $region32: #{tpu_custom_call.1} parent=5 // pred_fallthru
        _
      %p882 = scmp.le.s32.totalorder 2, %s23
      // Predicated region
      $region65: #{tpu_custom_call.1} parent=5 // pred_check
        %p883 = pneg %p882
      $region66: #{tpu_custom_call.1} parent=5 // pred_check_branch
        %885 = sbr.rel (%p883) target = $region68
      $region67: #{tpu_custom_call.1} parent=5 // pred_region
        %s886 = ssub.s32 %s23, 2
        // Predicated region
        $region69: #{tpu_custom_call.1} parent=67 // pred_check
          %p887 = pneg %p155
        $region70: #{tpu_custom_call.1} parent=67 // pred_check_branch
          %889 = sbr.rel (%p887) target = $region72
        $region71: #{tpu_custom_call.1} parent=67 // pred_region
          %s890 = sand.u32 %s140, 1
          %s891 = scalar_lea.sflag [#allocation6], %s890
          %s892 = sand.u32 %s140, 1
          %s893 = smul.addr %s892, 128
          %s894 = scalar_lea.vmem [#allocation10], %s893
          %895 = dma.done %s891, 2048
        $region72: #{tpu_custom_call.1} parent=67 // pred_fallthru
          _
        // Predicated region
        $region73: #{tpu_custom_call.1} parent=67 // pred_check
          %p896 = pneg %p181
        $region74: #{tpu_custom_call.1} parent=67 // pred_check_branch
          %898 = sbr.rel (%p896) target = $region76
        $region75: #{tpu_custom_call.1} parent=67 // pred_region
          %s899 = sand.u32 %s166, 1
          %s900 = scalar_lea.sflag [#allocation12], %s899
          %s901 = sand.u32 %s166, 1
          %s902 = smul.addr %s901, 8
          %s903 = scalar_lea.vmem [#allocation11], %s902
          %904 = dma.done %s900, 128
        $region76: #{tpu_custom_call.1} parent=67 // pred_fallthru
          _
      $region68: #{tpu_custom_call.1} parent=5 // pred_fallthru
        _
    $region6: #{tpu_custom_call.1} parent=1 // loop_footer
      %s27 = sadd.s32 1, %s23
    $region7: #{tpu_custom_call.1} parent=1 // loop_footer_branch
      %22 = sbr.rel target = $region3
    $region8: #{tpu_custom_call.1} parent=1 // loop_exit
      _
    %905 = vsyncpa [#allocation5], 1
    %s906 = scalar_lea.sflag [#allocation5], 1
    %907 = vsyncpa %s906, 1
    %908 = vsyncpa [#allocation8], 1
    %s909 = scalar_lea.sflag [#allocation8], 1
    %910 = vsyncpa %s909, 1
    %911 = vsyncpa [#allocation6], 1
    %s912 = scalar_lea.sflag [#allocation6], 1
    %913 = vsyncpa %s912, 1
    %914 = vsyncpa [#allocation12], 1
    %s915 = scalar_lea.sflag [#allocation12], 1
    %916 = vsyncpa %s915, 1

</llo_original>
